<compile_context>
chip_gen: v5e
topology: v5e:2x2
jax: 0.10.0
libtpu: 0.0.40
codegen_flags: <defaults>
</compile_context>

<pallas_src>
import functools

import numpy as np

import jax
import jax.numpy as jnp
from jax.experimental import pallas as pl
from jax.experimental.pallas import tpu as pltpu


def _focal_loss_kernel(x_ref, lab_ref, acc_a_ref, acc_w_ref, *,
                       gamma, eps, alpha, num_class, tiles_per_core, hw_valid):
    """One (S, 128) pixel tile: logits x_ref is (C, S, 128), labels lab_ref is (S, 128)."""
    cc = pl.program_id(0)   # core-split axis (size 1 or 2)
    i = pl.program_id(2)    # reduction axis over pixel tiles (last grid axis)

    @pl.when(i == 0)
    def _():
        acc_a_ref[...] = jnp.zeros_like(acc_a_ref)
        acc_w_ref[...] = jnp.zeros_like(acc_w_ref)

    labels = lab_ref[...]                                   # (S, 128) int32, fully dense

    # Pass 1: running max over the (small) class axis — elementwise max on dense vregs.
    mx = x_ref[0].astype(jnp.float32)
    for k in range(1, num_class):
        mx = jnp.maximum(mx, x_ref[k].astype(jnp.float32))

    # Pass 2: sum(exp), logit gathered at the label class, alpha gathered at the label
    # class — all via `labels == k` selects; no (C, T) one-hot materialization.
    sum_exp = jnp.zeros_like(mx)
    x_lab = jnp.zeros_like(mx)
    alpha_row = jnp.zeros_like(mx)
    for k in range(num_class):
        xk = x_ref[k].astype(jnp.float32)
        sum_exp = sum_exp + jnp.exp(xk - mx)
        sel = labels == k
        x_lab = jnp.where(sel, xk, x_lab)
        alpha_row = jnp.where(sel, jnp.float32(alpha[k]), alpha_row)

    z = x_lab - mx - jnp.log(sum_exp)        # log-softmax at the label class
    pt = jnp.exp(z) + eps                    # keep torch's `+ eps` quirk exactly
    log_pt = jnp.log(pt)                     # (exact; z alone would drop one EUP log but
                                             #  changes results when pt < ~1e-7)

    one_minus_pt = 1.0 - pt
    if isinstance(gamma, int):
        focal_w = jax.lax.integer_pow(one_minus_pt, gamma)   # static int -> multiplies
    else:
        # clamp avoids NaN from pow(negative, non-integer) when pt = 1 + eps
        focal_w = jnp.power(jnp.maximum(one_minus_pt, 0.0), jnp.float32(gamma))

    w_term = focal_w * log_pt

    if hw_valid is not None:
        # HW was padded up to a lane/tile multiple in the wrapper: mask the tail pixels.
        s, lanes = labels.shape
        row_ids = jax.lax.broadcasted_iota(jnp.int32, (s, lanes), 0)
        lane_ids = jax.lax.broadcasted_iota(jnp.int32, (s, lanes), 1)
        tile = cc * tiles_per_core + i
        gidx = (tile * s + row_ids) * lanes + lane_ids
        valid = gidx < hw_valid
        alpha_row = jnp.where(valid, alpha_row, 0.0)
        w_term = jnp.where(valid, w_term, 0.0)

    # Dense per-pixel partial sums accumulated into resident VMEM output blocks.
    acc_a_ref[...] += alpha_row
    acc_w_ref[...] += w_term


def _pick_rows(r_raw, c, requested_pixels, x_itemsize, vmem_budget_bytes=12 << 20):
    """Pick rows-per-tile S (pixel tile = S x 128 lanes).

    Returns (S, num_tiles, padded_row_count). S is a multiple of 8 (or equal to the full
    row count), capped by a VMEM budget that covers double-buffered inputs, the resident
    accumulators and elementwise intermediates — conservative even for v7x (32 MiB scoped
    default / 64 MiB physical).
    """
    lanes = 128
    bytes_per_row = (2 * c * lanes * x_itemsize   # double-buffered logits block
                     + 2 * lanes * 4              # double-buffered labels block
                     + 2 * lanes * 4              # two resident f32 accumulators
                     + 12 * lanes * 4)            # elementwise intermediates headroom
    cap_rows = max(8, int(vmem_budget_bytes // bytes_per_row))
    want_rows = max(8, min(requested_pixels // lanes, cap_rows))
    if r_raw <= want_rows:
        return r_raw, 1, r_raw                    # single tile; block dim == full dim
    s = (want_rows // 8) * 8
    num_tiles = -(-r_raw // s)
    return s, num_tiles, num_tiles * s


def focal_loss(input_batch, label_batch, *, num_class, alpha=None, gamma=2,
               balance_index=-1, smooth=None, size_average=True, tile_hw=65536):
    """Pallas port of FocalLoss.forward for 4-D NCHW logits and integer labels."""
    assert smooth is None  # TODO(synk): smooth-path clamps one_hot; not exercised (default None)
    n, c, h, w = input_batch.shape
    assert c == num_class
    hw = h * w
    m = n * hw
    lanes = 128

    # alpha init (same as the module's __init__); it is static, so close over Python
    # scalars — no VMEM operand, no per-tile where-sum over a (C,1) block.
    if alpha is None:
        alpha_vec = np.ones((c,), np.float32)
    elif isinstance(alpha, float):
        alpha_vec = np.full((c,), 1.0 - alpha, np.float32)
        alpha_vec[balance_index] = alpha
    else:
        alpha_vec = np.asarray(alpha, np.float32).reshape(c)
        alpha_vec = alpha_vec / alpha_vec.sum()
    alpha_tuple = tuple(float(a) for a in alpha_vec)

    # Lay pixels across BOTH sublanes and lanes: pure reshape, no transpose.
    r_raw = -(-hw // lanes)
    s, num_tiles, r = _pick_rows(r_raw, c, tile_hw, input_batch.dtype.itemsize)
    hw_pad = r * lanes

    x3d = input_batch.reshape(n, c, hw)
    lab2d = label_batch.reshape(n, hw).astype(jnp.int32)
    if hw_pad != hw:
        pad = hw_pad - hw
        x3d = jnp.pad(x3d, ((0, 0), (0, 0), (0, pad)))
        lab2d = jnp.pad(lab2d, ((0, 0), (0, pad)), constant_values=num_class)  # sentinel
        hw_valid = hw
    else:
        hw_valid = None
    x4d = x3d.reshape(n, c, r, lanes)          # (N, C, R, 128)
    lab3d = lab2d.reshape(n, r, lanes)         # (N, R, 128)
    # NOTE: labels could be carried as int8 (num_class small) to trim HBM traffic on
    # bandwidth-poor v5e; kept int32 here for layout simplicity.

    # v7x megacore: if the batch axis alone can't feed 2 TensorCores, split the tile
    # range across a leading parallel axis with per-core accumulator slabs.
    core_split = 2 if (n % 2 == 1 and num_tiles % 2 == 0 and num_tiles >= 2) else 1
    tiles_per_core = num_tiles // core_split
    grid = (core_split, n, tiles_per_core)

    kernel = functools.partial(
        _focal_loss_kernel, gamma=gamma, eps=1e-10, alpha=alpha_tuple,
        num_class=c, tiles_per_core=tiles_per_core, hw_valid=hw_valid)

    vmem_est = (2 * c * s * lanes * input_batch.dtype.itemsize   # dbl-buffered logits
                + 2 * s * lanes * 4                              # dbl-buffered labels
                + 2 * s * lanes * 4                              # resident accumulators
                + 12 * s * lanes * 4)                            # intermediates headroom
    vmem_limit = int(max(vmem_est + (4 << 20), 16 << 20))

    acc_a, acc_w = pl.pallas_call(
        kernel,
        out_shape=(jax.ShapeDtypeStruct((core_split, n, s, lanes), jnp.float32),
                   jax.ShapeDtypeStruct((core_split, n, s, lanes), jnp.float32)),
        grid_spec=pltpu.PrefetchScalarGridSpec(
            num_scalar_prefetch=0,
            grid=grid,
            in_specs=[
                pl.BlockSpec((None, c, s, lanes),
                             lambda cc, b, i: (b, 0, cc * tiles_per_core + i, 0)),
                pl.BlockSpec((None, s, lanes),
                             lambda cc, b, i: (b, cc * tiles_per_core + i, 0)),
            ],
            out_specs=(
                pl.BlockSpec((None, None, s, lanes), lambda cc, b, i: (cc, b, 0, 0)),
                pl.BlockSpec((None, None, s, lanes), lambda cc, b, i: (cc, b, 0, 0)),
            ),
        ),
        compiler_params=pltpu.CompilerParams(
            dimension_semantics=("parallel", "parallel", "arbitrary"),
            vmem_limit_bytes=vmem_limit),
    )(x4d, lab3d)

    # Tiny cross-lane reduction + the (M,1,M) broadcast-quirk combine in plain JAX.
    s_alpha = jnp.sum(acc_a)
    s_w = jnp.sum(acc_w)
    total = -s_alpha * s_w
    if size_average:
        total = total / (jnp.float32(m) * jnp.float32(m))
    return total


def _focal_loss_ref(input_batch, label_batch, num_class, gamma=2):
    """Pure-JAX reference mirroring the torch code (incl. its broadcasting quirk)."""
    n, c, h, w = input_batch.shape
    p = jax.nn.softmax(input_batch.astype(jnp.float32), axis=1)
    logit = jnp.transpose(p, (0, 2, 3, 1)).reshape(-1, c)
    idx = label_batch.reshape(-1, 1).astype(jnp.int32)
    one_hot = jax.nn.one_hot(idx[:, 0], c, dtype=jnp.float32)
    pt = (one_hot * logit).sum(1) + 1e-10
    log_pt = jnp.log(pt)
    alpha = jnp.ones((c, 1), jnp.float32)
    a = alpha[idx]                                          # (M, 1, 1), same as torch
    loss = -1.0 * a * jnp.power(1.0 - pt, gamma) * log_pt   # broadcasts to (M, 1, M)
    return loss.mean()


if __name__ == "__main__":
    key = jax.random.PRNGKey(0)
    kx, kl, kx2, kl2 = jax.random.split(key, 4)

    # Case 1: HW is a multiple of 128 (no padding path).
    N, C, H, W = 2, 4, 16, 16
    x = jax.random.normal(kx, (N, C, H, W), dtype=jnp.float32)
    labels = jax.random.randint(kl, (N, H, W), 0, C, dtype=jnp.int32)
    loss = jax.block_until_ready(focal_loss(x, labels, num_class=C, gamma=2))
    ref = _focal_loss_ref(x, labels, C, gamma=2)
    assert jnp.allclose(loss, ref, rtol=1e-5, atol=1e-6), (loss, ref)

    # Case 2: HW not a multiple of 128 (exercises the padded/masked path).
    H2, W2 = 12, 12
    x2 = jax.random.normal(kx2, (N, C, H2, W2), dtype=jnp.float32)
    labels2 = jax.random.randint(kl2, (N, H2, W2), 0, C, dtype=jnp.int32)
    loss2 = jax.block_until_ready(focal_loss(x2, labels2, num_class=C, gamma=2))
    ref2 = _focal_loss_ref(x2, labels2, C, gamma=2)
    assert jnp.allclose(loss2, ref2, rtol=1e-5, atol=1e-6), (loss2, ref2)

    print("KERNEL_OK")
</pallas_src>

<mosaic_0001>
module attributes {stable_mosaic.version = 11 : i64} {
  func.func @_focal_loss_kernel(%arg0: i32, %arg1: i32, %arg2: i32, %arg3: memref<1x4x2x128xf32, #tpu.memory_space<vmem>>, %arg4: memref<1x2x128xi32, #tpu.memory_space<vmem>>, %arg5: memref<1x1x2x128xf32, #tpu.memory_space<vmem>>, %arg6: memref<1x1x2x128xf32, #tpu.memory_space<vmem>>) attributes {dimension_semantics = [#tpu.dimension_semantics<parallel>, #tpu.dimension_semantics<parallel>, #tpu.dimension_semantics<arbitrary>], iteration_bounds = array<i64: 1, 2, 1>, scalar_prefetch = 0 : i64, scratch_operands = 0 : i64, tpu.core_type = #tpu.core_type<tc>, window_params = [{transform_indices = @transform_0, window_bounds = array<i64: 1, 4, 2, 128>}, {transform_indices = @transform_1, window_bounds = array<i64: 1, 2, 128>}, {transform_indices = @transform_2, window_bounds = array<i64: 1, 1, 2, 128>}, {transform_indices = @transform_3, window_bounds = array<i64: 1, 1, 2, 128>}]} {
    %c0_i32 = arith.constant 0 : i32
    %0 = arith.cmpi eq, %arg2, %c0_i32 : i32
    %1 = arith.extui %0 : i1 to i32
    %c0_i32_0 = arith.constant 0 : i32
    %2 = arith.cmpi ne, %1, %c0_i32_0 : i32
    scf.if %2 {
      %cst_57 = arith.constant 0.000000e+00 : f32
      %82 = vector.broadcast %cst_57 : f32 to vector<2x128xf32>
      %c0_58 = arith.constant 0 : index
      %c0_59 = arith.constant 0 : index
      %c0_60 = arith.constant 0 : index
      %c0_61 = arith.constant 0 : index
      %83 = vector.load %arg5[%c0_58, %c0_59, %c0_60, %c0_61] : memref<1x1x2x128xf32, #tpu.memory_space<vmem>>, vector<1x1x2x128xf32>
      %84 = vector.shape_cast %83 : vector<1x1x2x128xf32> to vector<2x128xf32>
      %85 = vector.shape_cast %82 : vector<2x128xf32> to vector<1x1x2x128xf32>
      tpu.vector_store %arg5[%c0_58, %c0_59, %c0_60, %c0_61], %85 {strides = array<i32>} : memref<1x1x2x128xf32, #tpu.memory_space<vmem>>, vector<1x1x2x128xf32>,
      %cst_62 = arith.constant 0.000000e+00 : f32
      %86 = vector.broadcast %cst_62 : f32 to vector<2x128xf32>
      %c0_63 = arith.constant 0 : index
      %c0_64 = arith.constant 0 : index
      %c0_65 = arith.constant 0 : index
      %c0_66 = arith.constant 0 : index
      %87 = vector.load %arg6[%c0_63, %c0_64, %c0_65, %c0_66] : memref<1x1x2x128xf32, #tpu.memory_space<vmem>>, vector<1x1x2x128xf32>
      %88 = vector.shape_cast %87 : vector<1x1x2x128xf32> to vector<2x128xf32>
      %89 = vector.shape_cast %86 : vector<2x128xf32> to vector<1x1x2x128xf32>
      tpu.vector_store %arg6[%c0_63, %c0_64, %c0_65, %c0_66], %89 {strides = array<i32>} : memref<1x1x2x128xf32, #tpu.memory_space<vmem>>, vector<1x1x2x128xf32>,
    } else {
    }
    %c0 = arith.constant 0 : index
    %c0_1 = arith.constant 0 : index
    %c0_2 = arith.constant 0 : index
    %3 = vector.load %arg4[%c0, %c0_1, %c0_2] : memref<1x2x128xi32, #tpu.memory_space<vmem>>, vector<1x2x128xi32>
    %4 = vector.shape_cast %3 : vector<1x2x128xi32> to vector<2x128xi32>
    %c0_3 = arith.constant 0 : index
    %c0_4 = arith.constant 0 : index
    %c0_5 = arith.constant 0 : index
    %c0_6 = arith.constant 0 : index
    %5 = vector.load %arg3[%c0_3, %c0_4, %c0_5, %c0_6] : memref<1x4x2x128xf32, #tpu.memory_space<vmem>>, vector<1x1x2x128xf32>
    %6 = vector.shape_cast %5 : vector<1x1x2x128xf32> to vector<2x128xf32>
    %c0_7 = arith.constant 0 : index
    %c1 = arith.constant 1 : index
    %c0_8 = arith.constant 0 : index
    %c0_9 = arith.constant 0 : index
    %7 = vector.load %arg3[%c0_7, %c1, %c0_8, %c0_9] : memref<1x4x2x128xf32, #tpu.memory_space<vmem>>, vector<1x1x2x128xf32>
    %8 = vector.shape_cast %7 : vector<1x1x2x128xf32> to vector<2x128xf32>
    %9 = arith.maximumf %6, %8 : vector<2x128xf32>
    %c0_10 = arith.constant 0 : index
    %c2 = arith.constant 2 : index
    %c0_11 = arith.constant 0 : index
    %c0_12 = arith.constant 0 : index
    %10 = vector.load %arg3[%c0_10, %c2, %c0_11, %c0_12] : memref<1x4x2x128xf32, #tpu.memory_space<vmem>>, vector<1x1x2x128xf32>
    %11 = vector.shape_cast %10 : vector<1x1x2x128xf32> to vector<2x128xf32>
    %12 = arith.maximumf %9, %11 : vector<2x128xf32>
    %c0_13 = arith.constant 0 : index
    %c3 = arith.constant 3 : index
    %c0_14 = arith.constant 0 : index
    %c0_15 = arith.constant 0 : index
    %13 = vector.load %arg3[%c0_13, %c3, %c0_14, %c0_15] : memref<1x4x2x128xf32, #tpu.memory_space<vmem>>, vector<1x1x2x128xf32>
    %14 = vector.shape_cast %13 : vector<1x1x2x128xf32> to vector<2x128xf32>
    %15 = arith.maximumf %12, %14 : vector<2x128xf32>
    %cst = arith.constant 0.000000e+00 : f32
    %16 = vector.broadcast %cst : f32 to vector<2x128xf32>
    %cst_16 = arith.constant 0.000000e+00 : f32
    %17 = vector.broadcast %cst_16 : f32 to vector<2x128xf32>
    %cst_17 = arith.constant 0.000000e+00 : f32
    %18 = vector.broadcast %cst_17 : f32 to vector<2x128xf32>
    %c0_18 = arith.constant 0 : index
    %c0_19 = arith.constant 0 : index
    %c0_20 = arith.constant 0 : index
    %c0_21 = arith.constant 0 : index
    %19 = vector.load %arg3[%c0_18, %c0_19, %c0_20, %c0_21] : memref<1x4x2x128xf32, #tpu.memory_space<vmem>>, vector<1x1x2x128xf32>
    %20 = vector.shape_cast %19 : vector<1x1x2x128xf32> to vector<2x128xf32>
    %21 = arith.subf %20, %15 : vector<2x128xf32>
    %22 = math.exp %21 : vector<2x128xf32>
    %23 = arith.addf %16, %22 : vector<2x128xf32>
    %c0_i32_22 = arith.constant 0 : i32
    %24 = vector.broadcast %c0_i32_22 : i32 to vector<2x128xi32>
    %25 = arith.cmpi eq, %4, %24 : vector<2x128xi32>
    %26 = arith.select %25, %20, %17 : vector<2x128xi1>, vector<2x128xf32>
    %cst_23 = arith.constant 1.000000e+00 : f32
    %27 = vector.broadcast %cst_23 : f32 to vector<2x128xf32>
    %28 = arith.select %25, %27, %18 : vector<2x128xi1>, vector<2x128xf32>
    %c0_24 = arith.constant 0 : index
    %c1_25 = arith.constant 1 : index
    %c0_26 = arith.constant 0 : index
    %c0_27 = arith.constant 0 : index
    %29 = vector.load %arg3[%c0_24, %c1_25, %c0_26, %c0_27] : memref<1x4x2x128xf32, #tpu.memory_space<vmem>>, vector<1x1x2x128xf32>
    %30 = vector.shape_cast %29 : vector<1x1x2x128xf32> to vector<2x128xf32>
    %31 = arith.subf %30, %15 : vector<2x128xf32>
    %32 = math.exp %31 : vector<2x128xf32>
    %33 = arith.addf %23, %32 : vector<2x128xf32>
    %c1_i32 = arith.constant 1 : i32
    %34 = vector.broadcast %c1_i32 : i32 to vector<2x128xi32>
    %35 = arith.cmpi eq, %4, %34 : vector<2x128xi32>
    %36 = arith.select %35, %30, %26 : vector<2x128xi1>, vector<2x128xf32>
    %cst_28 = arith.constant 1.000000e+00 : f32
    %37 = vector.broadcast %cst_28 : f32 to vector<2x128xf32>
    %38 = arith.select %35, %37, %28 : vector<2x128xi1>, vector<2x128xf32>
    %c0_29 = arith.constant 0 : index
    %c2_30 = arith.constant 2 : index
    %c0_31 = arith.constant 0 : index
    %c0_32 = arith.constant 0 : index
    %39 = vector.load %arg3[%c0_29, %c2_30, %c0_31, %c0_32] : memref<1x4x2x128xf32, #tpu.memory_space<vmem>>, vector<1x1x2x128xf32>
    %40 = vector.shape_cast %39 : vector<1x1x2x128xf32> to vector<2x128xf32>
    %41 = arith.subf %40, %15 : vector<2x128xf32>
    %42 = math.exp %41 : vector<2x128xf32>
    %43 = arith.addf %33, %42 : vector<2x128xf32>
    %c2_i32 = arith.constant 2 : i32
    %44 = vector.broadcast %c2_i32 : i32 to vector<2x128xi32>
    %45 = arith.cmpi eq, %4, %44 : vector<2x128xi32>
    %46 = arith.select %45, %40, %36 : vector<2x128xi1>, vector<2x128xf32>
    %cst_33 = arith.constant 1.000000e+00 : f32
    %47 = vector.broadcast %cst_33 : f32 to vector<2x128xf32>
    %48 = arith.select %45, %47, %38 : vector<2x128xi1>, vector<2x128xf32>
    %c0_34 = arith.constant 0 : index
    %c3_35 = arith.constant 3 : index
    %c0_36 = arith.constant 0 : index
    %c0_37 = arith.constant 0 : index
    %49 = vector.load %arg3[%c0_34, %c3_35, %c0_36, %c0_37] : memref<1x4x2x128xf32, #tpu.memory_space<vmem>>, vector<1x1x2x128xf32>
    %50 = vector.shape_cast %49 : vector<1x1x2x128xf32> to vector<2x128xf32>
    %51 = arith.subf %50, %15 : vector<2x128xf32>
    %52 = math.exp %51 : vector<2x128xf32>
    %53 = arith.addf %43, %52 : vector<2x128xf32>
    %c3_i32 = arith.constant 3 : i32
    %54 = vector.broadcast %c3_i32 : i32 to vector<2x128xi32>
    %55 = arith.cmpi eq, %4, %54 : vector<2x128xi32>
    %56 = arith.select %55, %50, %46 : vector<2x128xi1>, vector<2x128xf32>
    %cst_38 = arith.constant 1.000000e+00 : f32
    %57 = vector.broadcast %cst_38 : f32 to vector<2x128xf32>
    %58 = arith.select %55, %57, %48 : vector<2x128xi1>, vector<2x128xf32>
    %59 = arith.subf %56, %15 : vector<2x128xf32>
    %60 = math.log %53 : vector<2x128xf32>
    %61 = arith.subf %59, %60 : vector<2x128xf32>
    %62 = math.exp %61 : vector<2x128xf32>
    %cst_39 = arith.constant 1.000000e-10 : f32
    %63 = vector.broadcast %cst_39 : f32 to vector<2x128xf32>
    %64 = arith.addf %62, %63 : vector<2x128xf32>
    %65 = math.log %64 : vector<2x128xf32>
    %cst_40 = arith.constant 1.000000e+00 : f32
    %66 = vector.broadcast %cst_40 : f32 to vector<2x128xf32>
    %67 = arith.subf %66, %64 : vector<2x128xf32>
    %68 = arith.mulf %67, %67 : vector<2x128xf32>
    %69 = arith.mulf %68, %65 : vector<2x128xf32>
    %c0_41 = arith.constant 0 : index
    %c0_42 = arith.constant 0 : index
    %c0_43 = arith.constant 0 : index
    %c0_44 = arith.constant 0 : index
    %70 = vector.load %arg5[%c0_41, %c0_42, %c0_43, %c0_44] : memref<1x1x2x128xf32, #tpu.memory_space<vmem>>, vector<1x1x2x128xf32>
    %71 = vector.shape_cast %70 : vector<1x1x2x128xf32> to vector<2x128xf32>
    %72 = arith.addf %71, %58 : vector<2x128xf32>
    %c0_45 = arith.constant 0 : index
    %c0_46 = arith.constant 0 : index
    %c0_47 = arith.constant 0 : index
    %c0_48 = arith.constant 0 : index
    %73 = vector.load %arg5[%c0_45, %c0_46, %c0_47, %c0_48] : memref<1x1x2x128xf32, #tpu.memory_space<vmem>>, vector<1x1x2x128xf32>
    %74 = vector.shape_cast %73 : vector<1x1x2x128xf32> to vector<2x128xf32>
    %75 = vector.shape_cast %72 : vector<2x128xf32> to vector<1x1x2x128xf32>
    tpu.vector_store %arg5[%c0_45, %c0_46, %c0_47, %c0_48], %75 {strides = array<i32>} : memref<1x1x2x128xf32, #tpu.memory_space<vmem>>, vector<1x1x2x128xf32>,
    %c0_49 = arith.constant 0 : index
    %c0_50 = arith.constant 0 : index
    %c0_51 = arith.constant 0 : index
    %c0_52 = arith.constant 0 : index
    %76 = vector.load %arg6[%c0_49, %c0_50, %c0_51, %c0_52] : memref<1x1x2x128xf32, #tpu.memory_space<vmem>>, vector<1x1x2x128xf32>
    %77 = vector.shape_cast %76 : vector<1x1x2x128xf32> to vector<2x128xf32>
    %78 = arith.addf %77, %69 : vector<2x128xf32>
    %c0_53 = arith.constant 0 : index
    %c0_54 = arith.constant 0 : index
    %c0_55 = arith.constant 0 : index
    %c0_56 = arith.constant 0 : index
    %79 = vector.load %arg6[%c0_53, %c0_54, %c0_55, %c0_56] : memref<1x1x2x128xf32, #tpu.memory_space<vmem>>, vector<1x1x2x128xf32>
    %80 = vector.shape_cast %79 : vector<1x1x2x128xf32> to vector<2x128xf32>
    %81 = vector.shape_cast %78 : vector<2x128xf32> to vector<1x1x2x128xf32>
    tpu.vector_store %arg6[%c0_53, %c0_54, %c0_55, %c0_56], %81 {strides = array<i32>} : memref<1x1x2x128xf32, #tpu.memory_space<vmem>>, vector<1x1x2x128xf32>,
    return
  }
  func.func @transform_0(%arg0: i32, %arg1: i32, %arg2: i32) -> (i32, i32, i32, i32) {
    %c1_i32 = arith.constant 1 : i32
    %0 = arith.muli %arg0, %c1_i32 : i32
    %1 = arith.addi %0, %arg2 : i32
    %c0_i32 = arith.constant 0 : i32
    %c0_i32_0 = arith.constant 0 : i32
    %c0_i32_1 = arith.constant 0 : i32
    return %arg1, %c0_i32, %1, %c0_i32_0 : i32, i32, i32, i32
  }
  func.func @transform_1(%arg0: i32, %arg1: i32, %arg2: i32) -> (i32, i32, i32) {
    %c1_i32 = arith.constant 1 : i32
    %0 = arith.muli %arg0, %c1_i32 : i32
    %1 = arith.addi %0, %arg2 : i32
    %c0_i32 = arith.constant 0 : i32
    %c0_i32_0 = arith.constant 0 : i32
    return %arg1, %1, %c0_i32 : i32, i32, i32
  }
  func.func @transform_2(%arg0: i32, %arg1: i32, %arg2: i32) -> (i32, i32, i32, i32) {
    %c0_i32 = arith.constant 0 : i32
    %c0_i32_0 = arith.constant 0 : i32
    %c0_i32_1 = arith.constant 0 : i32
    return %arg0, %arg1, %c0_i32, %c0_i32_0 : i32, i32, i32, i32
  }
  func.func @transform_3(%arg0: i32, %arg1: i32, %arg2: i32) -> (i32, i32, i32, i32) {
    %c0_i32 = arith.constant 0 : i32
    %c0_i32_0 = arith.constant 0 : i32
    %c0_i32_1 = arith.constant 0 : i32
    return %arg0, %arg1, %c0_i32, %c0_i32_0 : i32, i32, i32, i32
  }
}

</mosaic_0001>

<llo_original>
// kernel: tpu_custom_call.1
$region0: #{tpu_custom_call.1}
  #allocation0 [shape = 'u32[]', space=smem, size = 0x4, offset = 0x4, fixed_abs, tag = 'smem constant byte address 0x4 - core index']
  #allocation1 [shape = 'u32[72,128]{1,0:T(1,128)}', space=vmem, size = 0x9000, scoped, tag = 'internal scratch']
  %s0 = inlined_call_operand.hbm [shape: f32[2,4,2,128], index: 0, kind: input, shape index: {}]
  %s1 = inlined_call_operand.hbm [shape: s32[2,2,128], index: 1, kind: input, shape index: {}]
  %s2 = inlined_call_operand.hbm [shape: f32[1,2,2,128], index: 2, kind: output, shape index: {0}]
  %s3 = inlined_call_operand.hbm [shape: f32[1,2,2,128], index: 3, kind: output, shape index: {1}]
  %4 = xla_tuple %s2, %s3
  %s5 = sld [smem:[#allocation0]]
  $region61: #{tpu_custom_call.1} parent=0
    _
  %s7 = ssub.s32 1, %s5
  %s8 = scalar_select 0, %s7, %s5
  $region1: #{tpu_custom_call.1} parent=0
    #allocation2 [shape = 'u8[8192]{0}', space=vmem, size = 0x2000, scoped, tag = 'input window, operand 0']
    #allocation3 [shape = 's32[2]{0}', space=sflag, size = 0x8, scoped, tag = 'scoped memory for tpu_custom_call.1']
    #allocation4 [shape = 's32[2]{0}', space=sflag, size = 0x8, scoped, tag = 'scoped memory for tpu_custom_call.1']
    #allocation5 [shape = 'u8[2048]{0}', space=vmem, size = 0x800, scoped, tag = 'input window, operand 1']
    #allocation6 [shape = 's32[2]{0}', space=sflag, size = 0x8, scoped, tag = 'scoped memory for tpu_custom_call.1']
    #allocation7 [shape = 'u8[2048]{0}', space=vmem, size = 0x800, scoped, tag = 'output window, operand 0']
    #allocation8 [shape = 'u8[2048]{0}', space=vmem, size = 0x800, scoped, tag = 'output window, operand 1']
    #allocation9 [shape = 's32[2]{0}', space=sflag, size = 0x8, scoped, tag = 'scoped memory for tpu_custom_call.1']
    %9 = vsyncpa [#allocation3], 0
    %s10 = scalar_lea.sflag [#allocation3], 1
    %11 = vsyncpa %s10, 0
    %12 = vsyncpa [#allocation6], 0
    %s13 = scalar_lea.sflag [#allocation6], 1
    %14 = vsyncpa %s13, 0
    %15 = vsyncpa [#allocation4], 0
    %s16 = scalar_lea.sflag [#allocation4], 1
    %17 = vsyncpa %s16, 0
    %18 = vsyncpa [#allocation9], 0
    %s19 = scalar_lea.sflag [#allocation9], 1
    %20 = vsyncpa %s19, 0
    loop: start=0, step=1, limit=4
    $region2: #{tpu_custom_call.1} parent=1 // loop_pre_header
      _
    $region3: #{tpu_custom_call.1} parent=1 // loop_header
      %s22 = sphi 0, %s26
      %p23 = scmp.ge.s32.totalorder %s22, 4
      %s29 = sphi 0, %s48
      %s30 = sphi 0, %s44
      %s31 = sphi 0, %s40
      %s32 = sphi 0, %s29
      %s33 = sphi 0, %s30
      %s34 = sphi 0, %s31
      %s35 = sphi 0, %s32
      %s36 = sphi 0, %s33
      %s37 = sphi 0, %s34
      %s55 = sphi 0, %s57
      %s58 = sphi 0, %s55
      %s59 = sphi 0, %s58
      %s75 = sphi 0, %s59
      %s85 = sphi 0, %s87
      %s88 = sphi 0, %s85
      %s89 = sphi 0, %s88
      %s105 = sphi 0, %s89
      %s113 = sphi 0, %s115
      %s116 = sphi 0, %s113
      %s117 = sphi 0, %s116
      %s133 = sphi 0, %s117
      %s141 = sphi 0, %s143
      %s144 = sphi 0, %s141
      %s145 = sphi 0, %s144
      %s161 = sphi 0, %s145
    $region4: #{tpu_custom_call.1} parent=1 // loop_header_branch
      %25 = sbr.rel (%p23) target = $region8
    $region5: #{tpu_custom_call.1} parent=1 // loop_body
      %s27 = ssub.s32 %s22, 1
      %s28 = ssub.s32 %s22, 2
      %s38 = sadd.s32 1, %s31
      %p39 = scmp.ge.s32.totalorder %s38, 1
      %s40 = scalar_select %p39, 0, %s38
      %s41 = sadd.s32 1, %s30
      %s42 = scalar_select %p39, %s41, %s30
      %p43 = scmp.ge.s32.totalorder %s42, 2
      %s44 = scalar_select %p43, 0, %s42
      %s45 = sadd.s32 1, %s29
      %s46 = scalar_select %p43, %s45, %s29
      %p47 = scmp.ge.s32.totalorder %s46, 1
      %s48 = scalar_select %p47, 0, %s46
      %s49 = sadd.s32 %s29, %s31
      %s50 = sadd.s32 %s48, %s40
      %s51 = ssub.s32 %s30, %s44
      %s52 = ssub.s32 %s49, %s50
      %s53 = sor.u32 %s51, %s52
      %p54 = scmp.eq.s32.totalorder %s53, 0
      %s56 = sadd.s32 %s55, 1
      %s57 = scalar_select %p54, %s55, %s56
      %p60 = pneg %p54
      %p61 = scmp.eq.s32.totalorder %s22, 1
      %p62 = por %p60, %p61
      %p63 = scmp.ne.s32.totalorder %s55, %s58
      %p64 = scmp.eq.s32.totalorder %s22, 0
      %p65 = por %p63, %p64
      %p66 = scmp.ne.s32.totalorder %s55, %s58
      %p67 = scmp.eq.s32.totalorder %s27, 1
      %p68 = por %p66, %p67
      %p69 = scmp.ne.s32.totalorder %s58, %s59
      %p70 = scmp.eq.s32.totalorder %s27, 0
      %p71 = por %p69, %p70
      %p72 = scmp.ne.s32.totalorder %s58, %s59
      %p73 = scmp.eq.s32.totalorder %s28, 1
      %p74 = por %p72, %p73
      %p76 = scmp.ne.s32.totalorder %s59, %s75
      %p77 = scmp.eq.s32.totalorder %s28, 0
      %p78 = por %p76, %p77
      %s79 = sadd.s32 %s29, %s31
      %s80 = sadd.s32 %s48, %s40
      %s81 = ssub.s32 %s30, %s44
      %s82 = ssub.s32 %s79, %s80
      %s83 = sor.u32 %s81, %s82
      %p84 = scmp.eq.s32.totalorder %s83, 0
      %s86 = sadd.s32 %s85, 1
      %s87 = scalar_select %p84, %s85, %s86
      %p90 = pneg %p84
      %p91 = scmp.eq.s32.totalorder %s22, 1
      %p92 = por %p90, %p91
      %p93 = scmp.ne.s32.totalorder %s85, %s88
      %p94 = scmp.eq.s32.totalorder %s22, 0
      %p95 = por %p93, %p94
      %p96 = scmp.ne.s32.totalorder %s85, %s88
      %p97 = scmp.eq.s32.totalorder %s27, 1
      %p98 = por %p96, %p97
      %p99 = scmp.ne.s32.totalorder %s88, %s89
      %p100 = scmp.eq.s32.totalorder %s27, 0
      %p101 = por %p99, %p100
      %p102 = scmp.ne.s32.totalorder %s88, %s89
      %p103 = scmp.eq.s32.totalorder %s28, 1
      %p104 = por %p102, %p103
      %p106 = scmp.ne.s32.totalorder %s89, %s105
      %p107 = scmp.eq.s32.totalorder %s28, 0
      %p108 = por %p106, %p107
      %s109 = ssub.s32 %s29, %s48
      %s110 = ssub.s32 %s30, %s44
      %s111 = sor.u32 %s109, %s110
      %p112 = scmp.eq.s32.totalorder %s111, 0
      %s114 = sadd.s32 %s113, 1
      %s115 = scalar_select %p112, %s113, %s114
      %p118 = pneg %p112
      %p119 = scmp.eq.s32.totalorder %s22, 1
      %p120 = por %p118, %p119
      %p121 = scmp.ne.s32.totalorder %s113, %s116
      %p122 = scmp.eq.s32.totalorder %s22, 0
      %p123 = por %p121, %p122
      %p124 = scmp.ne.s32.totalorder %s113, %s116
      %p125 = scmp.eq.s32.totalorder %s27, 1
      %p126 = por %p124, %p125
      %p127 = scmp.ne.s32.totalorder %s116, %s117
      %p128 = scmp.eq.s32.totalorder %s27, 0
      %p129 = por %p127, %p128
      %p130 = scmp.ne.s32.totalorder %s116, %s117
      %p131 = scmp.eq.s32.totalorder %s28, 1
      %p132 = por %p130, %p131
      %p134 = scmp.ne.s32.totalorder %s117, %s133
      %p135 = scmp.eq.s32.totalorder %s28, 0
      %p136 = por %p134, %p135
      %s137 = ssub.s32 %s29, %s48
      %s138 = ssub.s32 %s30, %s44
      %s139 = sor.u32 %s137, %s138
      %p140 = scmp.eq.s32.totalorder %s139, 0
      %s142 = sadd.s32 %s141, 1
      %s143 = scalar_select %p140, %s141, %s142
      %p146 = pneg %p140
      %p147 = scmp.eq.s32.totalorder %s22, 1
      %p148 = por %p146, %p147
      %p149 = scmp.ne.s32.totalorder %s141, %s144
      %p150 = scmp.eq.s32.totalorder %s22, 0
      %p151 = por %p149, %p150
      %p152 = scmp.ne.s32.totalorder %s141, %s144
      %p153 = scmp.eq.s32.totalorder %s27, 1
      %p154 = por %p152, %p153
      %p155 = scmp.ne.s32.totalorder %s144, %s145
      %p156 = scmp.eq.s32.totalorder %s27, 0
      %p157 = por %p155, %p156
      %p158 = scmp.ne.s32.totalorder %s144, %s145
      %p159 = scmp.eq.s32.totalorder %s28, 1
      %p160 = por %p158, %p159
      %p162 = scmp.ne.s32.totalorder %s145, %s161
      %p163 = scmp.eq.s32.totalorder %s28, 0
      %p164 = por %p162, %p163
      %p165 = scmp.le.s32.totalorder 1, %s22
      %p166 = scmp.lt.s32.totalorder %s22, 3
      %p167 = pnand %p165, %p166
      %p168 = pneg %p167
      // Predicated region
      $region9: #{tpu_custom_call.1} parent=5 // pred_check
        _
      $region10: #{tpu_custom_call.1} parent=5 // pred_check_branch
        %170 = sbr.rel (%p167) target = $region12
      $region11: #{tpu_custom_call.1} parent=5 // pred_region
        %s171 = ssub.s32 %s22, 1
      $region12: #{tpu_custom_call.1} parent=5 // pred_fallthru
        _
      %p172 = scmp.lt.s32.totalorder %s22, 2
      // Predicated region
      $region13: #{tpu_custom_call.1} parent=5 // pred_check
        %p173 = pneg %p172
      $region14: #{tpu_custom_call.1} parent=5 // pred_check_branch
        %175 = sbr.rel (%p173) target = $region16
      $region15: #{tpu_custom_call.1} parent=5 // pred_region
        // Predicated region
        $region17: #{tpu_custom_call.1} parent=15 // pred_check
          %p176 = pneg %p65
        $region18: #{tpu_custom_call.1} parent=15 // pred_check_branch
          %178 = sbr.rel (%p176) target = $region20
        $region19: #{tpu_custom_call.1} parent=15 // pred_region
          %s179 = sand.u32 %s55, 1
          %s180 = scalar_lea.sflag [#allocation3], %s179
          %s181 = sand.u32 %s55, 1
          %s182 = smul.addr %s181, 8
          %s183 = scalar_lea.vmem [#allocation2], %s182
          %s184 = sadd.s32 %s29, %s31
          %186 = vsyncadd %s180, 0
          %s187 = smul.addr %s30, 4
          %s188 = sadd.s32 %s184, %s187
          %s189 = smul.addr %s188, 2
          %s190 = scalar_lea.hbm %s0, %s189
          %s191 = sshll.u32 %s190, 4
          %s192 = int_to_ptr.hbm [resolvable:$true] %s191
          %s193 = sshll.u32 %s183, 4
          %s194 = int_to_ptr.vmem [resolvable:$true] %s193
          %199 = dma.hbm_to_vmem [thread:$0]  %s192, 128, %s194, %s180, 32, 32, 2
        $region20: #{tpu_custom_call.1} parent=15 // pred_fallthru
          _
        // Predicated region
        $region21: #{tpu_custom_call.1} parent=15 // pred_check
          %p200 = pneg %p95
        $region22: #{tpu_custom_call.1} parent=15 // pred_check_branch
          %202 = sbr.rel (%p200) target = $region24
        $region23: #{tpu_custom_call.1} parent=15 // pred_region
          %s203 = sand.u32 %s85, 1
          %s204 = scalar_lea.sflag [#allocation6], %s203
          %s205 = sand.u32 %s85, 1
          %s206 = smul.addr %s205, 2
          %s207 = scalar_lea.vmem [#allocation5], %s206
          %s208 = sadd.s32 %s29, %s31
          %210 = vsyncadd %s204, 0
          %s211 = sadd.s32 %s208, %s30
          %s212 = smul.addr %s211, 2
          %s213 = scalar_lea.hbm %s1, %s212
          %s215 = sshll.u32 %s213, 4
          %s216 = int_to_ptr.hbm [resolvable:$true] %s215
          %s217 = sshll.u32 %s207, 4
          %s218 = int_to_ptr.vmem [resolvable:$true] %s217
          %220 = dma.hbm_to_vmem [thread:$0]  %s216, 32, %s218, %s204
        $region24: #{tpu_custom_call.1} parent=15 // pred_fallthru
          _
      $region16: #{tpu_custom_call.1} parent=5 // pred_fallthru
        _
      %p221 = scmp.le.s32.totalorder 1, %s22
      %p222 = scmp.lt.s32.totalorder %s22, 3
      %p223 = pnand %p221, %p222
      %p224 = pneg %p223
      // Predicated region
      $region25: #{tpu_custom_call.1} parent=5 // pred_check
        _
      $region26: #{tpu_custom_call.1} parent=5 // pred_check_branch
        %226 = sbr.rel (%p223) target = $region28
      $region27: #{tpu_custom_call.1} parent=5 // pred_region
        %s227 = ssub.s32 %s22, 1
        %s228 = sand.u32 %s58, 1
        %s229 = scalar_lea.sflag [#allocation3], %s228
        %s230 = sand.u32 %s58, 1
        %s231 = smul.addr %s230, 8
        %s232 = scalar_lea.vmem [#allocation2], %s231
        // Predicated region
        $region29: #{tpu_custom_call.1} parent=27 // pred_check
          %p233 = pneg %p71
        $region30: #{tpu_custom_call.1} parent=27 // pred_check_branch
          %235 = sbr.rel (%p233) target = $region32
        $region31: #{tpu_custom_call.1} parent=27 // pred_region
          %237 = dma.done %s229, 128
        $region32: #{tpu_custom_call.1} parent=27 // pred_fallthru
          _
        %s238 = sand.u32 %s88, 1
        %s239 = scalar_lea.sflag [#allocation6], %s238
        %s240 = sand.u32 %s88, 1
        %s241 = smul.addr %s240, 2
        %s242 = scalar_lea.vmem [#allocation5], %s241
        // Predicated region
        $region33: #{tpu_custom_call.1} parent=27 // pred_check
          %p243 = pneg %p101
        $region34: #{tpu_custom_call.1} parent=27 // pred_check_branch
          %245 = sbr.rel (%p243) target = $region36
        $region35: #{tpu_custom_call.1} parent=27 // pred_region
          %247 = dma.done %s239, 32
        $region36: #{tpu_custom_call.1} parent=27 // pred_fallthru
          _
        %s248 = sand.u32 %s58, 1
        %s249 = scalar_lea.sflag [#allocation3], %s248
        %s250 = sand.u32 %s58, 1
        %s251 = smul.addr %s250, 8
        %s252 = scalar_lea.vmem [#allocation2], %s251
        %p253 = pneg %p71
        %p254 = pneg %p68
        %s255 = sand.u32 %s88, 1
        %s256 = scalar_lea.sflag [#allocation6], %s255
        %s257 = sand.u32 %s88, 1
        %s258 = smul.addr %s257, 2
        %s259 = scalar_lea.vmem [#allocation5], %s258
        %p260 = pneg %p101
        %p261 = pneg %p98
        %p262 = pneg %p129
        %p263 = pneg %p126
        %s264 = sand.u32 %s116, 1
        %s265 = scalar_lea.sflag [#allocation4], %s264
        %s266 = sand.u32 %s116, 1
        %s267 = smul.addr %s266, 2
        %s268 = scalar_lea.vmem [#allocation7], %s267
        %p269 = pneg %p157
        %p270 = pneg %p154
        %s271 = sand.u32 %s144, 1
        %s272 = scalar_lea.sflag [#allocation9], %s271
        %s273 = sand.u32 %s144, 1
        %s274 = smul.addr %s273, 2
        %s275 = scalar_lea.vmem [#allocation8], %s274
        %s276 = sadd.s32 %s32, %s34
        %s277 = sadd.s32 %s32, %s34
        %p278 = scmp.eq.s32.totalorder %s34, 0
        // Predicated region
        $region37: #{tpu_custom_call.1} parent=27 // pred_check
          %p279 = pneg %p278
        $region38: #{tpu_custom_call.1} parent=27 // pred_check_branch
          %281 = sbr.rel (%p279) target = $region40
        $region39: #{tpu_custom_call.1} parent=27 // pred_region
          %282 = vst [vmem:[%s268] sm:$0x3] 0.0
          %283 = vst [vmem:[%s275] sm:$0x3] 0.0
        $region40: #{tpu_custom_call.1} parent=27 // pred_fallthru
          _
        %v284 = vld [vmem:[%s242] sm:$0x3]
        %v285 = vld [vmem:[%s232] sm:$0x3]
        %s286 = scalar_lea.vmem %s232, 2 [#allocation2]
        %v287 = vld [vmem:[%s286] sm:$0x3]
        %v288 = vmax.f32 %v285, %v287
        %s289 = scalar_lea.vmem %s232, 4 [#allocation2]
        %v290 = vld [vmem:[%s289] sm:$0x3]
        %v291 = vmax.f32 %v288, %v290
        %s292 = scalar_lea.vmem %s232, 6 [#allocation2]
        %v293 = vld [vmem:[%s292] sm:$0x3]
        %v294 = vmax.f32 %v291, %v293
        %v295 = vsub.f32 %v285, %v294
        %v296 = vmul.f32 %v295, 1.442695
        %v297 = vpow.pop %v296
        %v298 = vadd.f32 %v297, 0.0
        %vm299 = vcmp.eq.s32.totalorder %v284, 0
        %v300 = vsel %vm299, %v285, 0.0
        %v301 = vsel %vm299, 1.0, 0.0
        %v302 = vsub.f32 %v287, %v294
        %v303 = vmul.f32 %v302, 1.442695
        %v304 = vpow.pop %v303
        %v305 = vadd.f32 %v298, %v304
        %vm306 = vcmp.eq.s32.totalorder %v284, 1
        %v307 = vsel %vm306, %v287, %v300
        %v308 = vsel %vm306, 1.0, %v301
        %v309 = vsub.f32 %v290, %v294
        %v310 = vmul.f32 %v309, 1.442695
        %v311 = vpow.pop %v310
        %v312 = vadd.f32 %v305, %v311
        %vm313 = vcmp.eq.s32.totalorder %v284, 2
        %v314 = vsel %vm313, %v290, %v307
        %v315 = vsel %vm313, 1.0, %v308
        %v316 = vsub.f32 %v293, %v294
        %v317 = vmul.f32 %v316, 1.442695
        %v318 = vpow.pop %v317
        %v319 = vadd.f32 %v312, %v318
        %vm320 = vcmp.eq.s32.totalorder %v284, 3
        %v321 = vsel %vm320, %v293, %v314
        %v322 = vsel %vm320, 1.0, %v315
        %v323 = vsub.f32 %v321, %v294
        %v324 = vlog2.pop %v319
        %v325 = vmul.f32 %v324, 0.6931472
        %v326 = vsub.f32 %v323, %v325
        %v327 = vmul.f32 %v326, 1.442695
        %v328 = vpow.pop %v327
        %v329 = vadd.f32 %v328, 1e-10
        %v330 = vlog2.pop %v329
        %v331 = vmul.f32 %v330, 0.6931472
        %v332 = vsub.f32 1.0, %v329
        %v333 = vmul.f32 %v332, %v332
        %v334 = vmul.f32 %v333, %v331
        %v335 = vld [vmem:[%s268] sm:$0x3]
        %v336 = vadd.f32 %v335, %v322
        %337 = vst [vmem:[%s268] sm:$0x3] %v336
        %v338 = vld [vmem:[%s275] sm:$0x3]
        %v339 = vadd.f32 %v338, %v334
        %340 = vst [vmem:[%s275] sm:$0x3] %v339
        %s341 = sand.u32 %s116, 1
        %s342 = scalar_lea.sflag [#allocation4], %s341
        %s343 = sand.u32 %s116, 1
        %s344 = smul.addr %s343, 2
        %s345 = scalar_lea.vmem [#allocation7], %s344
        %s346 = sand.u32 %s144, 1
        %s347 = scalar_lea.sflag [#allocation9], %s346
        %s348 = sand.u32 %s144, 1
        %s349 = smul.addr %s348, 2
        %s350 = scalar_lea.vmem [#allocation8], %s349
        // Predicated region
        $region41: #{tpu_custom_call.1} parent=27 // pred_check
          %p351 = pneg %p126
        $region42: #{tpu_custom_call.1} parent=27 // pred_check_branch
          %353 = sbr.rel (%p351) target = $region44
        $region43: #{tpu_custom_call.1} parent=27 // pred_region
          %355 = vsyncadd %s342, 0
          %s356 = smul.addr %s32, 2
          %s357 = sadd.s32 %s33, %s356
          %s358 = smul.addr %s357, 2
          %s359 = scalar_lea.hbm %s2, %s358
          %s361 = sshll.u32 %s345, 4
          %s362 = int_to_ptr.vmem [resolvable:$true] %s361
          %s363 = sshll.u32 %s359, 4
          %s364 = int_to_ptr.hbm [resolvable:$true] %s363
          %366 = dma.vmem_to_hbm [thread:$0]  %s362, 32, %s364, %s342
        $region44: #{tpu_custom_call.1} parent=27 // pred_fallthru
          _
        // Predicated region
        $region45: #{tpu_custom_call.1} parent=27 // pred_check
          %p367 = pneg %p154
        $region46: #{tpu_custom_call.1} parent=27 // pred_check_branch
          %369 = sbr.rel (%p367) target = $region48
        $region47: #{tpu_custom_call.1} parent=27 // pred_region
          %371 = vsyncadd %s347, 0
          %s372 = smul.addr %s32, 2
          %s373 = sadd.s32 %s33, %s372
          %s374 = smul.addr %s373, 2
          %s375 = scalar_lea.hbm %s3, %s374
          %s377 = sshll.u32 %s350, 4
          %s378 = int_to_ptr.vmem [resolvable:$true] %s377
          %s379 = sshll.u32 %s375, 4
          %s380 = int_to_ptr.hbm [resolvable:$true] %s379
          %382 = dma.vmem_to_hbm [thread:$0]  %s378, 32, %s380, %s347
        $region48: #{tpu_custom_call.1} parent=27 // pred_fallthru
          _
      $region28: #{tpu_custom_call.1} parent=5 // pred_fallthru
        _
      %p383 = scmp.le.s32.totalorder 2, %s22
      // Predicated region
      $region49: #{tpu_custom_call.1} parent=5 // pred_check
        %p384 = pneg %p383
      $region50: #{tpu_custom_call.1} parent=5 // pred_check_branch
        %386 = sbr.rel (%p384) target = $region52
      $region51: #{tpu_custom_call.1} parent=5 // pred_region
        %s387 = ssub.s32 %s22, 2
        // Predicated region
        $region53: #{tpu_custom_call.1} parent=51 // pred_check
          %p388 = pneg %p132
        $region54: #{tpu_custom_call.1} parent=51 // pred_check_branch
          %390 = sbr.rel (%p388) target = $region56
        $region55: #{tpu_custom_call.1} parent=51 // pred_region
          %s391 = sand.u32 %s117, 1
          %s392 = scalar_lea.sflag [#allocation4], %s391
          %s393 = sand.u32 %s117, 1
          %s394 = smul.addr %s393, 2
          %s395 = scalar_lea.vmem [#allocation7], %s394
          %397 = dma.done %s392, 32
        $region56: #{tpu_custom_call.1} parent=51 // pred_fallthru
          _
        // Predicated region
        $region57: #{tpu_custom_call.1} parent=51 // pred_check
          %p398 = pneg %p160
        $region58: #{tpu_custom_call.1} parent=51 // pred_check_branch
          %400 = sbr.rel (%p398) target = $region60
        $region59: #{tpu_custom_call.1} parent=51 // pred_region
          %s401 = sand.u32 %s145, 1
          %s402 = scalar_lea.sflag [#allocation9], %s401
          %s403 = sand.u32 %s145, 1
          %s404 = smul.addr %s403, 2
          %s405 = scalar_lea.vmem [#allocation8], %s404
          %407 = dma.done %s402, 32
        $region60: #{tpu_custom_call.1} parent=51 // pred_fallthru
          _
      $region52: #{tpu_custom_call.1} parent=5 // pred_fallthru
        _
    $region6: #{tpu_custom_call.1} parent=1 // loop_footer
      %s26 = sadd.s32 1, %s22
    $region7: #{tpu_custom_call.1} parent=1 // loop_footer_branch
      %21 = sbr.rel target = $region3
    $region8: #{tpu_custom_call.1} parent=1 // loop_exit
      _
    %408 = vsyncpa [#allocation3], 1
    %s409 = scalar_lea.sflag [#allocation3], 1
    %410 = vsyncpa %s409, 1
    %411 = vsyncpa [#allocation6], 1
    %s412 = scalar_lea.sflag [#allocation6], 1
    %413 = vsyncpa %s412, 1
    %414 = vsyncpa [#allocation4], 1
    %s415 = scalar_lea.sflag [#allocation4], 1
    %416 = vsyncpa %s415, 1
    %417 = vsyncpa [#allocation9], 1
    %s418 = scalar_lea.sflag [#allocation9], 1
    %419 = vsyncpa %s418, 1

</llo_original>
